<compile_context>
chip_gen: v7x
topology: tpu7x:2x2x1
jax: 0.10.0
libtpu: 0.0.40
codegen_flags: <defaults>
</compile_context>

<pallas_src>
import functools

import jax
import jax.numpy as jnp
from jax.experimental import pallas as pl
from jax.experimental.pallas import tpu as pltpu


def _round_up(n, m):
    return (n + m - 1) // m * m


def _head_kernel(x_ref, w1_ref, b1_ref, w2_ref, b2_ref, o_ref, emb_acc):
    """Fused bottleneck head: accumulate x@W1 over K tiles, then (emb)@W2."""
    k = pl.program_id(1)

    @pl.when(k == 0)
    def _():
        emb_acc[...] = jnp.zeros_like(emb_acc)

    # First linear: bf16 x bf16 -> f32 accumulate on the MXU.
    emb_acc[...] += jnp.dot(x_ref[...], w1_ref[...],
                            preferred_element_type=jnp.float32)

    @pl.when(k == pl.num_programs(1) - 1)
    def _():
        emb = emb_acc[...] + b1_ref[...]                        # f32 epilogue
        logits = jnp.dot(emb.astype(jnp.bfloat16), w2_ref[...],
                         preferred_element_type=jnp.float32)
        o_ref[...] = (logits + b2_ref[...]).astype(o_ref.dtype)


def _pad2d(a, rows, cols, dtype):
    """Cast + zero-pad a 2-D array only if needed (avoids spurious copies)."""
    a = a.astype(dtype)
    pr, pc = rows - a.shape[0], cols - a.shape[1]
    if pr or pc:
        a = jnp.pad(a, ((0, pr), (0, pc)))
    return a


@functools.partial(jax.jit, static_argnames=("tm", "tk"))
def bottleneck_head_forward(x, w1, b1, w2, b2, *, tm=256, tk=1024):
    """
    x : (M, num_features)         w1: (num_features, bottleneck)  b1: (bottleneck,)
    w2: (bottleneck, num_classes) b2: (num_classes,)
    Returns float32 logits of shape (M, num_classes).
    """
    M, K = x.shape
    B = w1.shape[1]
    N = w2.shape[1]

    # Lane-dense feature dims (multiples of 128 on the 128-lane axis).
    Bp = _round_up(B, 128)
    Np = _round_up(N, 128)

    # M tile: multiple of 16 for bf16 sublane packing; no bigger than needed.
    tm = min(tm, _round_up(M, 16))
    Mp = _round_up(M, tm)

    # K tile: multiple of 128 (or whole K); zero-pad K so tk divides it.
    tk = min(tk, _round_up(K, 128))
    Kp = _round_up(K, tk)

    # One-time, tiny packing: bf16 matmul operands, f32 biases. Zero padding
    # is numerically neutral for every dot / bias add below.
    xp = _pad2d(x, Mp, Kp, jnp.bfloat16)
    w1p = _pad2d(w1, Kp, Bp, jnp.bfloat16)
    w2p = _pad2d(w2, Bp, Np, jnp.bfloat16)
    b1p = _pad2d(b1.reshape(1, -1), 1, Bp, jnp.float32)
    b2p = _pad2d(b2.reshape(1, -1), 1, Np, jnp.float32)

    grid = (Mp // tm, Kp // tk)

    out = pl.pallas_call(
        _head_kernel,
        out_shape=jax.ShapeDtypeStruct((Mp, Np), jnp.float32),
        grid=grid,
        in_specs=[
            pl.BlockSpec((tm, tk), lambda i, k: (i, k)),   # x tile
            pl.BlockSpec((tk, Bp), lambda i, k: (k, 0)),   # W1 tile
            pl.BlockSpec((1, Bp), lambda i, k: (0, 0)),    # b1 (resident)
            pl.BlockSpec((Bp, Np), lambda i, k: (0, 0)),   # W2 (small, resident)
            pl.BlockSpec((1, Np), lambda i, k: (0, 0)),    # b2 (resident)
        ],
        out_specs=pl.BlockSpec((tm, Np), lambda i, k: (i, 0)),
        scratch_shapes=[pltpu.VMEM((tm, Bp), jnp.float32)],  # f32 embedding acc
        compiler_params=pltpu.CompilerParams(
            dimension_semantics=("parallel", "arbitrary")),
    )(xp, w1p, b1p, w2p, b2p)

    return out[:M, :N]


if __name__ == "__main__":
    key = jax.random.PRNGKey(0)
    kx, kw1, kb1, kw2, kb2 = jax.random.split(key, 5)

    # Small shapes consistent with the module:
    #   bottleneck_head(num_features=1024, num_classes=120, bottleneck_features=200)
    M, num_features, bottleneck_features, num_classes = 8, 1024, 200, 120

    x = jax.random.normal(kx, (M, num_features), jnp.float32)
    # nn.Linear default init: U(-1/sqrt(fan_in), 1/sqrt(fan_in)).
    lim1 = 1.0 / (num_features ** 0.5)
    w1 = jax.random.uniform(kw1, (num_features, bottleneck_features),
                            jnp.float32, -lim1, lim1)
    b1 = jax.random.uniform(kb1, (bottleneck_features,), jnp.float32, -lim1, lim1)
    lim2 = 1.0 / (bottleneck_features ** 0.5)
    w2 = jax.random.uniform(kw2, (bottleneck_features, num_classes),
                            jnp.float32, -lim2, lim2)
    b2 = jax.random.uniform(kb2, (num_classes,), jnp.float32, -lim2, lim2)

    logits = bottleneck_head_forward(x, w1, b1, w2, b2)
    logits = jax.block_until_ready(logits)
    assert logits.shape == (M, num_classes), logits.shape
    assert bool(jnp.all(jnp.isfinite(logits)))

    # Pure-JAX reference with matching bf16-input / f32-accumulate numerics.
    emb_ref = jnp.dot(x.astype(jnp.bfloat16), w1.astype(jnp.bfloat16),
                      preferred_element_type=jnp.float32) + b1
    ref = jnp.dot(emb_ref.astype(jnp.bfloat16), w2.astype(jnp.bfloat16),
                  preferred_element_type=jnp.float32) + b2
    assert bool(jnp.allclose(logits, ref, rtol=2e-2, atol=2e-2))

    print("KERNEL_OK")
</pallas_src>

<mosaic_0001>
module attributes {stable_mosaic.version = 11 : i64} {
  func.func @_head_kernel(%arg0: i32, %arg1: i32, %arg2: memref<16x1024xbf16, #tpu.memory_space<vmem>>, %arg3: memref<1024x256xbf16, #tpu.memory_space<vmem>>, %arg4: memref<1x256xf32, #tpu.memory_space<vmem>>, %arg5: memref<256x128xbf16, #tpu.memory_space<vmem>>, %arg6: memref<1x128xf32, #tpu.memory_space<vmem>>, %arg7: memref<16x128xf32, #tpu.memory_space<vmem>>, %arg8: memref<16x256xf32, #tpu.memory_space<vmem>>) attributes {dimension_semantics = [#tpu.dimension_semantics<parallel>, #tpu.dimension_semantics<arbitrary>], iteration_bounds = array<i64: 1, 1>, scalar_prefetch = 0 : i64, scratch_operands = 1 : i64, tpu.core_type = #tpu.core_type<tc>, window_params = [{transform_indices = @transform_0, window_bounds = array<i64: 16, 1024>}, {transform_indices = @transform_1, window_bounds = array<i64: 1024, 256>}, {pipeline_mode = #tpu.pipeline_mode<synchronous>, transform_indices = @transform_2, window_bounds = array<i64: 1, 256>}, {pipeline_mode = #tpu.pipeline_mode<synchronous>, transform_indices = @transform_3, window_bounds = array<i64: 256, 128>}, {pipeline_mode = #tpu.pipeline_mode<synchronous>, transform_indices = @transform_4, window_bounds = array<i64: 1, 128>}, {transform_indices = @transform_5, window_bounds = array<i64: 16, 128>}]} {
    %c0_i32 = arith.constant 0 : i32
    %0 = arith.cmpi eq, %arg1, %c0_i32 : i32
    %1 = arith.extui %0 : i1 to i32
    %c0_i32_0 = arith.constant 0 : i32
    %2 = arith.cmpi ne, %1, %c0_i32_0 : i32
    scf.if %2 {
      %cst_10 = arith.constant 0.000000e+00 : f32
      %12 = vector.broadcast %cst_10 : f32 to vector<16x256xf32>
      %c0_11 = arith.constant 0 : index
      %c0_12 = arith.constant 0 : index
      %13 = vector.load %arg8[%c0_11, %c0_12] : memref<16x256xf32, #tpu.memory_space<vmem>>, vector<16x256xf32>
      tpu.vector_store %arg8[%c0_11, %c0_12], %12 {strides = array<i32>} : memref<16x256xf32, #tpu.memory_space<vmem>>, vector<16x256xf32>,
    } else {
    }
    %c0 = arith.constant 0 : index
    %c0_1 = arith.constant 0 : index
    %3 = vector.load %arg8[%c0, %c0_1] : memref<16x256xf32, #tpu.memory_space<vmem>>, vector<16x256xf32>
    %c0_2 = arith.constant 0 : index
    %c0_3 = arith.constant 0 : index
    %4 = vector.load %arg2[%c0_2, %c0_3] : memref<16x1024xbf16, #tpu.memory_space<vmem>>, vector<16x1024xbf16>
    %c0_4 = arith.constant 0 : index
    %c0_5 = arith.constant 0 : index
    %5 = vector.load %arg3[%c0_4, %c0_5] : memref<1024x256xbf16, #tpu.memory_space<vmem>>, vector<1024x256xbf16>
    %cst = arith.constant dense<0.000000e+00> : vector<16x256xf32>
    %6 = tpu.matmul %4, %5, %cst {dimension_numbers = #tpu.dot_dimension_numbers<[1], [0], [0], [1], [0, 0, 1, 1], [], []>} : vector<16x1024xbf16>, vector<1024x256xbf16>, vector<16x256xf32> -> vector<16x256xf32>
    %7 = arith.addf %3, %6 : vector<16x256xf32>
    %c0_6 = arith.constant 0 : index
    %c0_7 = arith.constant 0 : index
    %8 = vector.load %arg8[%c0_6, %c0_7] : memref<16x256xf32, #tpu.memory_space<vmem>>, vector<16x256xf32>
    tpu.vector_store %arg8[%c0_6, %c0_7], %7 {strides = array<i32>} : memref<16x256xf32, #tpu.memory_space<vmem>>, vector<16x256xf32>,
    %c0_i32_8 = arith.constant 0 : i32
    %9 = arith.cmpi eq, %arg1, %c0_i32_8 : i32
    %10 = arith.extui %9 : i1 to i32
    %c0_i32_9 = arith.constant 0 : i32
    %11 = arith.cmpi ne, %10, %c0_i32_9 : i32
    scf.if %11 {
      %c0_10 = arith.constant 0 : index
      %c0_11 = arith.constant 0 : index
      %12 = vector.load %arg8[%c0_10, %c0_11] : memref<16x256xf32, #tpu.memory_space<vmem>>, vector<16x256xf32>
      %c0_12 = arith.constant 0 : index
      %c0_13 = arith.constant 0 : index
      %13 = vector.load %arg4[%c0_12, %c0_13] : memref<1x256xf32, #tpu.memory_space<vmem>>, vector<1x256xf32>
      %14 = vector.broadcast %13 : vector<1x256xf32> to vector<16x256xf32>
      %15 = arith.addf %12, %14 : vector<16x256xf32>
      %16 = arith.truncf %15 : vector<16x256xf32> to vector<16x256xbf16>
      %c0_14 = arith.constant 0 : index
      %c0_15 = arith.constant 0 : index
      %17 = vector.load %arg5[%c0_14, %c0_15] : memref<256x128xbf16, #tpu.memory_space<vmem>>, vector<256x128xbf16>
      %cst_16 = arith.constant dense<0.000000e+00> : vector<16x128xf32>
      %18 = tpu.matmul %16, %17, %cst_16 {dimension_numbers = #tpu.dot_dimension_numbers<[1], [0], [0], [1], [0, 0, 1, 1], [], []>} : vector<16x256xbf16>, vector<256x128xbf16>, vector<16x128xf32> -> vector<16x128xf32>
      %c0_17 = arith.constant 0 : index
      %c0_18 = arith.constant 0 : index
      %19 = vector.load %arg6[%c0_17, %c0_18] : memref<1x128xf32, #tpu.memory_space<vmem>>, vector<1x128xf32>
      %20 = vector.broadcast %19 : vector<1x128xf32> to vector<16x128xf32>
      %21 = arith.addf %18, %20 : vector<16x128xf32>
      %c0_19 = arith.constant 0 : index
      %c0_20 = arith.constant 0 : index
      %22 = vector.load %arg7[%c0_19, %c0_20] : memref<16x128xf32, #tpu.memory_space<vmem>>, vector<16x128xf32>
      tpu.vector_store %arg7[%c0_19, %c0_20], %21 {strides = array<i32>} : memref<16x128xf32, #tpu.memory_space<vmem>>, vector<16x128xf32>,
    } else {
    }
    return
  }
  func.func @transform_0(%arg0: i32, %arg1: i32) -> (i32, i32) {
    %c0_i32 = arith.constant 0 : i32
    return %arg0, %arg1 : i32, i32
  }
  func.func @transform_1(%arg0: i32, %arg1: i32) -> (i32, i32) {
    %c0_i32 = arith.constant 0 : i32
    %c0_i32_0 = arith.constant 0 : i32
    return %arg1, %c0_i32 : i32, i32
  }
  func.func @transform_2(%arg0: i32, %arg1: i32) -> (i32, i32) {
    %c0_i32 = arith.constant 0 : i32
    %c0_i32_0 = arith.constant 0 : i32
    %c0_i32_1 = arith.constant 0 : i32
    return %c0_i32, %c0_i32_0 : i32, i32
  }
  func.func @transform_3(%arg0: i32, %arg1: i32) -> (i32, i32) {
    %c0_i32 = arith.constant 0 : i32
    %c0_i32_0 = arith.constant 0 : i32
    %c0_i32_1 = arith.constant 0 : i32
    return %c0_i32, %c0_i32_0 : i32, i32
  }
  func.func @transform_4(%arg0: i32, %arg1: i32) -> (i32, i32) {
    %c0_i32 = arith.constant 0 : i32
    %c0_i32_0 = arith.constant 0 : i32
    %c0_i32_1 = arith.constant 0 : i32
    return %c0_i32, %c0_i32_0 : i32, i32
  }
  func.func @transform_5(%arg0: i32, %arg1: i32) -> (i32, i32) {
    %c0_i32 = arith.constant 0 : i32
    %c0_i32_0 = arith.constant 0 : i32
    return %arg0, %c0_i32 : i32, i32
  }
}

</mosaic_0001>

<llo_original>
// kernel: bottleneck_head_forward.1
$region0: #{bottleneck_head_forward.1}
  #allocation0 [shape = 'u32[]', space=smem, size = 0x4, offset = 0x4, fixed_abs, tag = 'smem constant byte address 0x4 - core index']
  #allocation1 [shape = 'u32[144,128]{1,0:T(1,128)}', space=vmem, size = 0x12000, scoped, tag = 'internal scratch']
  #allocation2 [shape = 'f32[16,256]{1,0:T(8,128)}', space=vmem, size = 0x4000, scoped, tag = 'scratch operand']
  %s0 = inlined_call_operand.vmem [shape: bf16[16,1024], index: 0, kind: input, shape index: {}]
  %s1 = inlined_call_operand.vmem [shape: bf16[1024,256], index: 1, kind: input, shape index: {}]
  %s2 = inlined_call_operand.vmem [shape: f32[1,256], index: 2, kind: input, shape index: {}]
  %s3 = inlined_call_operand.vmem [shape: bf16[256,128], index: 3, kind: input, shape index: {}]
  %s4 = inlined_call_operand.vmem [shape: f32[1,128], index: 4, kind: input, shape index: {}]
  %s5 = inlined_call_operand.vmem [shape: f32[16,128], index: 5, kind: output, shape index: {}]
  %s6 = sld [smem:[#allocation0]]
  $region38: #{bottleneck_head_forward.1} parent=0
    _
  %s8 = ssub.s32 1, %s6
  %s9 = scalar_select 0, %s8, %s6
  // Predicated region
  $region2: #{bottleneck_head_forward.1} parent=0 // pred_check
    _
  $region3: #{bottleneck_head_forward.1} parent=0 // pred_check_branch
    %11 = sbr.rel (0) target = $region5
  $region4: #{bottleneck_head_forward.1} parent=0 // pred_region
    _
  $region5: #{bottleneck_head_forward.1} parent=0 // pred_fallthru
    _
  // Predicated region
  $region6: #{bottleneck_head_forward.1} parent=0 // pred_check
    _
  $region7: #{bottleneck_head_forward.1} parent=0 // pred_check_branch
    %13 = sbr.rel (0) target = $region9
  $region8: #{bottleneck_head_forward.1} parent=0 // pred_region
    _
  $region9: #{bottleneck_head_forward.1} parent=0 // pred_fallthru
    _
  // Predicated region
  $region10: #{bottleneck_head_forward.1} parent=0 // pred_check
    _
  $region11: #{bottleneck_head_forward.1} parent=0 // pred_check_branch
    %15 = sbr.rel (0) target = $region13
  $region12: #{bottleneck_head_forward.1} parent=0 // pred_region
    _
  $region13: #{bottleneck_head_forward.1} parent=0 // pred_fallthru
    _
  // Predicated region
  $region14: #{bottleneck_head_forward.1} parent=0 // pred_check
    _
  $region15: #{bottleneck_head_forward.1} parent=0 // pred_check_branch
    %17 = sbr.rel (0) target = $region17
  $region16: #{bottleneck_head_forward.1} parent=0 // pred_region
    _
  $region17: #{bottleneck_head_forward.1} parent=0 // pred_fallthru
    _
  // Predicated region
  $region18: #{bottleneck_head_forward.1} parent=0 // pred_check
    _
  $region19: #{bottleneck_head_forward.1} parent=0 // pred_check_branch
    %19 = sbr.rel (0) target = $region21
  $region20: #{bottleneck_head_forward.1} parent=0 // pred_region
    _
  $region21: #{bottleneck_head_forward.1} parent=0 // pred_fallthru
    _
  %p21 = scmp.eq.s32.totalorder 0, 0
  // Predicated region
  $region22: #{bottleneck_head_forward.1} parent=0 // pred_check
    %p22 = pneg %p21
  $region23: #{bottleneck_head_forward.1} parent=0 // pred_check_branch
    %24 = sbr.rel (%p22) target = $region25
  $region24: #{bottleneck_head_forward.1} parent=0 // pred_region
    %25 = vst [vmem:[#allocation2] sm:$0xff] 0.0
    %26 = vst [vmem:[#allocation2 + $0x8] sm:$0xff] 0.0
    %27 = vst [vmem:[#allocation2 + $0x10] sm:$0xff] 0.0
    %28 = vst [vmem:[#allocation2 + $0x18] sm:$0xff] 0.0
  $region25: #{bottleneck_head_forward.1} parent=0 // pred_fallthru
    _
  %v29 = vld [vmem:[#allocation2] sm:$0xff]
  %v30 = vld [vmem:[#allocation2 + $0x8] sm:$0xff]
  %v31 = vld [vmem:[#allocation2 + $0x10] sm:$0xff]
  %v32 = vld [vmem:[#allocation2 + $0x18] sm:$0xff]
  %v33 = vld [vmem:[%s0] sm:$0xff]
  %v34 = vld [vmem:[%s0 + $0x8] sm:$0xff]
  %v35 = vld [vmem:[%s0 + $0x10] sm:$0xff]
  %v36 = vld [vmem:[%s0 + $0x18] sm:$0xff]
  %v37 = vld [vmem:[%s0 + $0x20] sm:$0xff]
  %v38 = vld [vmem:[%s0 + $0x28] sm:$0xff]
  %v39 = vld [vmem:[%s0 + $0x30] sm:$0xff]
  %v40 = vld [vmem:[%s0 + $0x38] sm:$0xff]
  %v41 = vld [vmem:[%s1] sm:$0xff]
  %v42 = vld [vmem:[%s1 + $0x8] sm:$0xff]
  %v43 = vld [vmem:[%s1 + $0x10] sm:$0xff]
  %v44 = vld [vmem:[%s1 + $0x18] sm:$0xff]
  %v45 = vld [vmem:[%s1 + $0x20] sm:$0xff]
  %v46 = vld [vmem:[%s1 + $0x28] sm:$0xff]
  %v47 = vld [vmem:[%s1 + $0x30] sm:$0xff]
  %v48 = vld [vmem:[%s1 + $0x38] sm:$0xff]
  %v49 = vld [vmem:[%s1 + $0x40] sm:$0xff]
  %v50 = vld [vmem:[%s1 + $0x48] sm:$0xff]
  %v51 = vld [vmem:[%s1 + $0x50] sm:$0xff]
  %v52 = vld [vmem:[%s1 + $0x58] sm:$0xff]
  %v53 = vld [vmem:[%s1 + $0x60] sm:$0xff]
  %v54 = vld [vmem:[%s1 + $0x68] sm:$0xff]
  %v55 = vld [vmem:[%s1 + $0x70] sm:$0xff]
  %v56 = vld [vmem:[%s1 + $0x78] sm:$0xff]
  %v57 = vld [vmem:[%s1 + $0x80] sm:$0xff]
  %v58 = vld [vmem:[%s1 + $0x88] sm:$0xff]
  %v59 = vld [vmem:[%s1 + $0x90] sm:$0xff]
  %v60 = vld [vmem:[%s1 + $0x98] sm:$0xff]
  %v61 = vld [vmem:[%s1 + $0xa0] sm:$0xff]
  %v62 = vld [vmem:[%s1 + $0xa8] sm:$0xff]
  %v63 = vld [vmem:[%s1 + $0xb0] sm:$0xff]
  %v64 = vld [vmem:[%s1 + $0xb8] sm:$0xff]
  %v65 = vld [vmem:[%s1 + $0xc0] sm:$0xff]
  %v66 = vld [vmem:[%s1 + $0xc8] sm:$0xff]
  %v67 = vld [vmem:[%s1 + $0xd0] sm:$0xff]
  %v68 = vld [vmem:[%s1 + $0xd8] sm:$0xff]
  %v69 = vld [vmem:[%s1 + $0xe0] sm:$0xff]
  %v70 = vld [vmem:[%s1 + $0xe8] sm:$0xff]
  %v71 = vld [vmem:[%s1 + $0xf0] sm:$0xff]
  %v72 = vld [vmem:[%s1 + $0xf8] sm:$0xff]
  %v73 = vld [vmem:[%s1 + $0x100] sm:$0xff]
  %v74 = vld [vmem:[%s1 + $0x108] sm:$0xff]
  %v75 = vld [vmem:[%s1 + $0x110] sm:$0xff]
  %v76 = vld [vmem:[%s1 + $0x118] sm:$0xff]
  %v77 = vld [vmem:[%s1 + $0x120] sm:$0xff]
  %v78 = vld [vmem:[%s1 + $0x128] sm:$0xff]
  %v79 = vld [vmem:[%s1 + $0x130] sm:$0xff]
  %v80 = vld [vmem:[%s1 + $0x138] sm:$0xff]
  %v81 = vld [vmem:[%s1 + $0x140] sm:$0xff]
  %v82 = vld [vmem:[%s1 + $0x148] sm:$0xff]
  %v83 = vld [vmem:[%s1 + $0x150] sm:$0xff]
  %v84 = vld [vmem:[%s1 + $0x158] sm:$0xff]
  %v85 = vld [vmem:[%s1 + $0x160] sm:$0xff]
  %v86 = vld [vmem:[%s1 + $0x168] sm:$0xff]
  %v87 = vld [vmem:[%s1 + $0x170] sm:$0xff]
  %v88 = vld [vmem:[%s1 + $0x178] sm:$0xff]
  %v89 = vld [vmem:[%s1 + $0x180] sm:$0xff]
  %v90 = vld [vmem:[%s1 + $0x188] sm:$0xff]
  %v91 = vld [vmem:[%s1 + $0x190] sm:$0xff]
  %v92 = vld [vmem:[%s1 + $0x198] sm:$0xff]
  %v93 = vld [vmem:[%s1 + $0x1a0] sm:$0xff]
  %v94 = vld [vmem:[%s1 + $0x1a8] sm:$0xff]
  %v95 = vld [vmem:[%s1 + $0x1b0] sm:$0xff]
  %v96 = vld [vmem:[%s1 + $0x1b8] sm:$0xff]
  %v97 = vld [vmem:[%s1 + $0x1c0] sm:$0xff]
  %v98 = vld [vmem:[%s1 + $0x1c8] sm:$0xff]
  %v99 = vld [vmem:[%s1 + $0x1d0] sm:$0xff]
  %v100 = vld [vmem:[%s1 + $0x1d8] sm:$0xff]
  %v101 = vld [vmem:[%s1 + $0x1e0] sm:$0xff]
  %v102 = vld [vmem:[%s1 + $0x1e8] sm:$0xff]
  %v103 = vld [vmem:[%s1 + $0x1f0] sm:$0xff]
  %v104 = vld [vmem:[%s1 + $0x1f8] sm:$0xff]
  %v105 = vld [vmem:[%s1 + $0x200] sm:$0xff]
  %v106 = vld [vmem:[%s1 + $0x208] sm:$0xff]
  %v107 = vld [vmem:[%s1 + $0x210] sm:$0xff]
  %v108 = vld [vmem:[%s1 + $0x218] sm:$0xff]
  %v109 = vld [vmem:[%s1 + $0x220] sm:$0xff]
  %v110 = vld [vmem:[%s1 + $0x228] sm:$0xff]
  %v111 = vld [vmem:[%s1 + $0x230] sm:$0xff]
  %v112 = vld [vmem:[%s1 + $0x238] sm:$0xff]
  %v113 = vld [vmem:[%s1 + $0x240] sm:$0xff]
  %v114 = vld [vmem:[%s1 + $0x248] sm:$0xff]
  %v115 = vld [vmem:[%s1 + $0x250] sm:$0xff]
  %v116 = vld [vmem:[%s1 + $0x258] sm:$0xff]
  %v117 = vld [vmem:[%s1 + $0x260] sm:$0xff]
  %v118 = vld [vmem:[%s1 + $0x268] sm:$0xff]
  %v119 = vld [vmem:[%s1 + $0x270] sm:$0xff]
  %v120 = vld [vmem:[%s1 + $0x278] sm:$0xff]
  %v121 = vld [vmem:[%s1 + $0x280] sm:$0xff]
  %v122 = vld [vmem:[%s1 + $0x288] sm:$0xff]
  %v123 = vld [vmem:[%s1 + $0x290] sm:$0xff]
  %v124 = vld [vmem:[%s1 + $0x298] sm:$0xff]
  %v125 = vld [vmem:[%s1 + $0x2a0] sm:$0xff]
  %v126 = vld [vmem:[%s1 + $0x2a8] sm:$0xff]
  %v127 = vld [vmem:[%s1 + $0x2b0] sm:$0xff]
  %v128 = vld [vmem:[%s1 + $0x2b8] sm:$0xff]
  %v129 = vld [vmem:[%s1 + $0x2c0] sm:$0xff]
  %v130 = vld [vmem:[%s1 + $0x2c8] sm:$0xff]
  %v131 = vld [vmem:[%s1 + $0x2d0] sm:$0xff]
  %v132 = vld [vmem:[%s1 + $0x2d8] sm:$0xff]
  %v133 = vld [vmem:[%s1 + $0x2e0] sm:$0xff]
  %v134 = vld [vmem:[%s1 + $0x2e8] sm:$0xff]
  %v135 = vld [vmem:[%s1 + $0x2f0] sm:$0xff]
  %v136 = vld [vmem:[%s1 + $0x2f8] sm:$0xff]
  %v137 = vld [vmem:[%s1 + $0x300] sm:$0xff]
  %v138 = vld [vmem:[%s1 + $0x308] sm:$0xff]
  %v139 = vld [vmem:[%s1 + $0x310] sm:$0xff]
  %v140 = vld [vmem:[%s1 + $0x318] sm:$0xff]
  %v141 = vld [vmem:[%s1 + $0x320] sm:$0xff]
  %v142 = vld [vmem:[%s1 + $0x328] sm:$0xff]
  %v143 = vld [vmem:[%s1 + $0x330] sm:$0xff]
  %v144 = vld [vmem:[%s1 + $0x338] sm:$0xff]
  %v145 = vld [vmem:[%s1 + $0x340] sm:$0xff]
  %v146 = vld [vmem:[%s1 + $0x348] sm:$0xff]
  %v147 = vld [vmem:[%s1 + $0x350] sm:$0xff]
  %v148 = vld [vmem:[%s1 + $0x358] sm:$0xff]
  %v149 = vld [vmem:[%s1 + $0x360] sm:$0xff]
  %v150 = vld [vmem:[%s1 + $0x368] sm:$0xff]
  %v151 = vld [vmem:[%s1 + $0x370] sm:$0xff]
  %v152 = vld [vmem:[%s1 + $0x378] sm:$0xff]
  %v153 = vld [vmem:[%s1 + $0x380] sm:$0xff]
  %v154 = vld [vmem:[%s1 + $0x388] sm:$0xff]
  %v155 = vld [vmem:[%s1 + $0x390] sm:$0xff]
  %v156 = vld [vmem:[%s1 + $0x398] sm:$0xff]
  %v157 = vld [vmem:[%s1 + $0x3a0] sm:$0xff]
  %v158 = vld [vmem:[%s1 + $0x3a8] sm:$0xff]
  %v159 = vld [vmem:[%s1 + $0x3b0] sm:$0xff]
  %v160 = vld [vmem:[%s1 + $0x3b8] sm:$0xff]
  %v161 = vld [vmem:[%s1 + $0x3c0] sm:$0xff]
  %v162 = vld [vmem:[%s1 + $0x3c8] sm:$0xff]
  %v163 = vld [vmem:[%s1 + $0x3d0] sm:$0xff]
  %v164 = vld [vmem:[%s1 + $0x3d8] sm:$0xff]
  %v165 = vld [vmem:[%s1 + $0x3e0] sm:$0xff]
  %v166 = vld [vmem:[%s1 + $0x3e8] sm:$0xff]
  %v167 = vld [vmem:[%s1 + $0x3f0] sm:$0xff]
  %v168 = vld [vmem:[%s1 + $0x3f8] sm:$0xff]
  %v177 = vunpack.c.l.b16 %v33
  %v178 = vunpack.c.h.b16 %v33
  %v179 = vunpack.c.l.b16 %v34
  %v180 = vunpack.c.h.b16 %v34
  %v181 = vunpack.c.l.b16 %v35
  %v182 = vunpack.c.h.b16 %v35
  %v183 = vunpack.c.l.b16 %v36
  %v184 = vunpack.c.h.b16 %v36
  %v185 = vunpack.c.l.b16 %v37
  %v186 = vunpack.c.h.b16 %v37
  %v187 = vunpack.c.l.b16 %v38
  %v188 = vunpack.c.h.b16 %v38
  %v189 = vunpack.c.l.b16 %v39
  %v190 = vunpack.c.h.b16 %v39
  %v191 = vunpack.c.l.b16 %v40
  %v192 = vunpack.c.h.b16 %v40
  %v193 = vpack.c.b16 %v185, %v177
  %v194 = vpack.c.b16 %v186, %v178
  %v195 = vpack.c.b16 %v187, %v179
  %v196 = vpack.c.b16 %v188, %v180
  %v197 = vpack.c.b16 %v189, %v181
  %v198 = vpack.c.b16 %v190, %v182
  %v199 = vpack.c.b16 %v191, %v183
  %v200 = vpack.c.b16 %v192, %v184
  %v337 = vunpack.c.l.b16 %v41
  %v338 = vunpack.c.h.b16 %v41
  %v339 = vunpack.c.l.b16 %v42
  %v340 = vunpack.c.h.b16 %v42
  %v341 = vunpack.c.l.b16 %v43
  %v342 = vunpack.c.h.b16 %v43
  %v343 = vunpack.c.l.b16 %v44
  %v344 = vunpack.c.h.b16 %v44
  %v345 = vunpack.c.l.b16 %v45
  %v346 = vunpack.c.h.b16 %v45
  %v347 = vunpack.c.l.b16 %v46
  %v348 = vunpack.c.h.b16 %v46
  %v349 = vunpack.c.l.b16 %v47
  %v350 = vunpack.c.h.b16 %v47
  %v351 = vunpack.c.l.b16 %v48
  %v352 = vunpack.c.h.b16 %v48
  %v353 = vunpack.c.l.b16 %v49
  %v354 = vunpack.c.h.b16 %v49
  %v355 = vunpack.c.l.b16 %v50
  %v356 = vunpack.c.h.b16 %v50
  %v357 = vunpack.c.l.b16 %v51
  %v358 = vunpack.c.h.b16 %v51
  %v359 = vunpack.c.l.b16 %v52
  %v360 = vunpack.c.h.b16 %v52
  %v361 = vunpack.c.l.b16 %v53
  %v362 = vunpack.c.h.b16 %v53
  %v363 = vunpack.c.l.b16 %v54
  %v364 = vunpack.c.h.b16 %v54
  %v365 = vunpack.c.l.b16 %v55
  %v366 = vunpack.c.h.b16 %v55
  %v367 = vunpack.c.l.b16 %v56
  %v368 = vunpack.c.h.b16 %v56
  %v369 = vunpack.c.l.b16 %v57
  %v370 = vunpack.c.h.b16 %v57
  %v371 = vunpack.c.l.b16 %v58
  %v372 = vunpack.c.h.b16 %v58
  %v373 = vunpack.c.l.b16 %v59
  %v374 = vunpack.c.h.b16 %v59
  %v375 = vunpack.c.l.b16 %v60
  %v376 = vunpack.c.h.b16 %v60
  %v377 = vunpack.c.l.b16 %v61
  %v378 = vunpack.c.h.b16 %v61
  %v379 = vunpack.c.l.b16 %v62
  %v380 = vunpack.c.h.b16 %v62
  %v381 = vunpack.c.l.b16 %v63
  %v382 = vunpack.c.h.b16 %v63
  %v383 = vunpack.c.l.b16 %v64
  %v384 = vunpack.c.h.b16 %v64
  %v385 = vunpack.c.l.b16 %v65
  %v386 = vunpack.c.h.b16 %v65
  %v387 = vunpack.c.l.b16 %v66
  %v388 = vunpack.c.h.b16 %v66
  %v389 = vunpack.c.l.b16 %v67
  %v390 = vunpack.c.h.b16 %v67
  %v391 = vunpack.c.l.b16 %v68
  %v392 = vunpack.c.h.b16 %v68
  %v393 = vunpack.c.l.b16 %v69
  %v394 = vunpack.c.h.b16 %v69
  %v395 = vunpack.c.l.b16 %v70
  %v396 = vunpack.c.h.b16 %v70
  %v397 = vunpack.c.l.b16 %v71
  %v398 = vunpack.c.h.b16 %v71
  %v399 = vunpack.c.l.b16 %v72
  %v400 = vunpack.c.h.b16 %v72
  %v401 = vunpack.c.l.b16 %v73
  %v402 = vunpack.c.h.b16 %v73
  %v403 = vunpack.c.l.b16 %v74
  %v404 = vunpack.c.h.b16 %v74
  %v405 = vunpack.c.l.b16 %v75
  %v406 = vunpack.c.h.b16 %v75
  %v407 = vunpack.c.l.b16 %v76
  %v408 = vunpack.c.h.b16 %v76
  %v409 = vunpack.c.l.b16 %v77
  %v410 = vunpack.c.h.b16 %v77
  %v411 = vunpack.c.l.b16 %v78
  %v412 = vunpack.c.h.b16 %v78
  %v413 = vunpack.c.l.b16 %v79
  %v414 = vunpack.c.h.b16 %v79
  %v415 = vunpack.c.l.b16 %v80
  %v416 = vunpack.c.h.b16 %v80
  %v417 = vunpack.c.l.b16 %v81
  %v418 = vunpack.c.h.b16 %v81
  %v419 = vunpack.c.l.b16 %v82
  %v420 = vunpack.c.h.b16 %v82
  %v421 = vunpack.c.l.b16 %v83
  %v422 = vunpack.c.h.b16 %v83
  %v423 = vunpack.c.l.b16 %v84
  %v424 = vunpack.c.h.b16 %v84
  %v425 = vunpack.c.l.b16 %v85
  %v426 = vunpack.c.h.b16 %v85
  %v427 = vunpack.c.l.b16 %v86
  %v428 = vunpack.c.h.b16 %v86
  %v429 = vunpack.c.l.b16 %v87
  %v430 = vunpack.c.h.b16 %v87
  %v431 = vunpack.c.l.b16 %v88
  %v432 = vunpack.c.h.b16 %v88
  %v433 = vunpack.c.l.b16 %v89
  %v434 = vunpack.c.h.b16 %v89
  %v435 = vunpack.c.l.b16 %v90
  %v436 = vunpack.c.h.b16 %v90
  %v437 = vunpack.c.l.b16 %v91
  %v438 = vunpack.c.h.b16 %v91
  %v439 = vunpack.c.l.b16 %v92
  %v440 = vunpack.c.h.b16 %v92
  %v441 = vunpack.c.l.b16 %v93
  %v442 = vunpack.c.h.b16 %v93
  %v443 = vunpack.c.l.b16 %v94
  %v444 = vunpack.c.h.b16 %v94
  %v445 = vunpack.c.l.b16 %v95
  %v446 = vunpack.c.h.b16 %v95
  %v447 = vunpack.c.l.b16 %v96
  %v448 = vunpack.c.h.b16 %v96
  %v449 = vunpack.c.l.b16 %v97
  %v450 = vunpack.c.h.b16 %v97
  %v451 = vunpack.c.l.b16 %v98
  %v452 = vunpack.c.h.b16 %v98
  %v453 = vunpack.c.l.b16 %v99
  %v454 = vunpack.c.h.b16 %v99
  %v455 = vunpack.c.l.b16 %v100
  %v456 = vunpack.c.h.b16 %v100
  %v457 = vunpack.c.l.b16 %v101
  %v458 = vunpack.c.h.b16 %v101
  %v459 = vunpack.c.l.b16 %v102
  %v460 = vunpack.c.h.b16 %v102
  %v461 = vunpack.c.l.b16 %v103
  %v462 = vunpack.c.h.b16 %v103
  %v463 = vunpack.c.l.b16 %v104
  %v464 = vunpack.c.h.b16 %v104
  %v465 = vunpack.c.l.b16 %v105
  %v466 = vunpack.c.h.b16 %v105
  %v467 = vunpack.c.l.b16 %v106
  %v468 = vunpack.c.h.b16 %v106
  %v469 = vunpack.c.l.b16 %v107
  %v470 = vunpack.c.h.b16 %v107
  %v471 = vunpack.c.l.b16 %v108
  %v472 = vunpack.c.h.b16 %v108
  %v473 = vunpack.c.l.b16 %v109
  %v474 = vunpack.c.h.b16 %v109
  %v475 = vunpack.c.l.b16 %v110
  %v476 = vunpack.c.h.b16 %v110
  %v477 = vunpack.c.l.b16 %v111
  %v478 = vunpack.c.h.b16 %v111
  %v479 = vunpack.c.l.b16 %v112
  %v480 = vunpack.c.h.b16 %v112
  %v481 = vunpack.c.l.b16 %v113
  %v482 = vunpack.c.h.b16 %v113
  %v483 = vunpack.c.l.b16 %v114
  %v484 = vunpack.c.h.b16 %v114
  %v485 = vunpack.c.l.b16 %v115
  %v486 = vunpack.c.h.b16 %v115
  %v487 = vunpack.c.l.b16 %v116
  %v488 = vunpack.c.h.b16 %v116
  %v489 = vunpack.c.l.b16 %v117
  %v490 = vunpack.c.h.b16 %v117
  %v491 = vunpack.c.l.b16 %v118
  %v492 = vunpack.c.h.b16 %v118
  %v493 = vunpack.c.l.b16 %v119
  %v494 = vunpack.c.h.b16 %v119
  %v495 = vunpack.c.l.b16 %v120
  %v496 = vunpack.c.h.b16 %v120
  %v497 = vunpack.c.l.b16 %v121
  %v498 = vunpack.c.h.b16 %v121
  %v499 = vunpack.c.l.b16 %v122
  %v500 = vunpack.c.h.b16 %v122
  %v501 = vunpack.c.l.b16 %v123
  %v502 = vunpack.c.h.b16 %v123
  %v503 = vunpack.c.l.b16 %v124
  %v504 = vunpack.c.h.b16 %v124
  %v505 = vunpack.c.l.b16 %v125
  %v506 = vunpack.c.h.b16 %v125
  %v507 = vunpack.c.l.b16 %v126
  %v508 = vunpack.c.h.b16 %v126
  %v509 = vunpack.c.l.b16 %v127
  %v510 = vunpack.c.h.b16 %v127
  %v511 = vunpack.c.l.b16 %v128
  %v512 = vunpack.c.h.b16 %v128
  %v513 = vunpack.c.l.b16 %v129
  %v514 = vunpack.c.h.b16 %v129
  %v515 = vunpack.c.l.b16 %v130
  %v516 = vunpack.c.h.b16 %v130
  %v517 = vunpack.c.l.b16 %v131
  %v518 = vunpack.c.h.b16 %v131
  %v519 = vunpack.c.l.b16 %v132
  %v520 = vunpack.c.h.b16 %v132
  %v521 = vunpack.c.l.b16 %v133
  %v522 = vunpack.c.h.b16 %v133
  %v523 = vunpack.c.l.b16 %v134
  %v524 = vunpack.c.h.b16 %v134
  %v525 = vunpack.c.l.b16 %v135
  %v526 = vunpack.c.h.b16 %v135
  %v527 = vunpack.c.l.b16 %v136
  %v528 = vunpack.c.h.b16 %v136
  %v529 = vunpack.c.l.b16 %v137
  %v530 = vunpack.c.h.b16 %v137
  %v531 = vunpack.c.l.b16 %v138
  %v532 = vunpack.c.h.b16 %v138
  %v533 = vunpack.c.l.b16 %v139
  %v534 = vunpack.c.h.b16 %v139
  %v535 = vunpack.c.l.b16 %v140
  %v536 = vunpack.c.h.b16 %v140
  %v537 = vunpack.c.l.b16 %v141
  %v538 = vunpack.c.h.b16 %v141
  %v539 = vunpack.c.l.b16 %v142
  %v540 = vunpack.c.h.b16 %v142
  %v541 = vunpack.c.l.b16 %v143
  %v542 = vunpack.c.h.b16 %v143
  %v543 = vunpack.c.l.b16 %v144
  %v544 = vunpack.c.h.b16 %v144
  %v545 = vunpack.c.l.b16 %v145
  %v546 = vunpack.c.h.b16 %v145
  %v547 = vunpack.c.l.b16 %v146
  %v548 = vunpack.c.h.b16 %v146
  %v549 = vunpack.c.l.b16 %v147
  %v550 = vunpack.c.h.b16 %v147
  %v551 = vunpack.c.l.b16 %v148
  %v552 = vunpack.c.h.b16 %v148
  %v553 = vunpack.c.l.b16 %v149
  %v554 = vunpack.c.h.b16 %v149
  %v555 = vunpack.c.l.b16 %v150
  %v556 = vunpack.c.h.b16 %v150
  %v557 = vunpack.c.l.b16 %v151
  %v558 = vunpack.c.h.b16 %v151
  %v559 = vunpack.c.l.b16 %v152
  %v560 = vunpack.c.h.b16 %v152
  %v561 = vunpack.c.l.b16 %v153
  %v562 = vunpack.c.h.b16 %v153
  %v563 = vunpack.c.l.b16 %v154
  %v564 = vunpack.c.h.b16 %v154
  %v565 = vunpack.c.l.b16 %v155
  %v566 = vunpack.c.h.b16 %v155
  %v567 = vunpack.c.l.b16 %v156
  %v568 = vunpack.c.h.b16 %v156
  %v569 = vunpack.c.l.b16 %v157
  %v570 = vunpack.c.h.b16 %v157
  %v571 = vunpack.c.l.b16 %v158
  %v572 = vunpack.c.h.b16 %v158
  %v573 = vunpack.c.l.b16 %v159
  %v574 = vunpack.c.h.b16 %v159
  %v575 = vunpack.c.l.b16 %v160
  %v576 = vunpack.c.h.b16 %v160
  %v577 = vunpack.c.l.b16 %v161
  %v578 = vunpack.c.h.b16 %v161
  %v579 = vunpack.c.l.b16 %v162
  %v580 = vunpack.c.h.b16 %v162
  %v581 = vunpack.c.l.b16 %v163
  %v582 = vunpack.c.h.b16 %v163
  %v583 = vunpack.c.l.b16 %v164
  %v584 = vunpack.c.h.b16 %v164
  %v585 = vunpack.c.l.b16 %v165
  %v586 = vunpack.c.h.b16 %v165
  %v587 = vunpack.c.l.b16 %v166
  %v588 = vunpack.c.h.b16 %v166
  %v589 = vunpack.c.l.b16 %v167
  %v590 = vunpack.c.h.b16 %v167
  %v591 = vunpack.c.l.b16 %v168
  %v592 = vunpack.c.h.b16 %v168
  %v593 = vpack.c.b16 %v339, %v337
  %v594 = vpack.c.b16 %v340, %v338
  %v595 = vpack.c.b16 %v343, %v341
  %v596 = vpack.c.b16 %v344, %v342
  %v597 = vpack.c.b16 %v347, %v345
  %v598 = vpack.c.b16 %v348, %v346
  %v599 = vpack.c.b16 %v351, %v349
  %v600 = vpack.c.b16 %v352, %v350
  %v601 = vpack.c.b16 %v355, %v353
  %v602 = vpack.c.b16 %v356, %v354
  %v603 = vpack.c.b16 %v359, %v357
  %v604 = vpack.c.b16 %v360, %v358
  %v605 = vpack.c.b16 %v363, %v361
  %v606 = vpack.c.b16 %v364, %v362
  %v607 = vpack.c.b16 %v367, %v365
  %v608 = vpack.c.b16 %v368, %v366
  %v609 = vpack.c.b16 %v371, %v369
  %v610 = vpack.c.b16 %v372, %v370
  %v611 = vpack.c.b16 %v375, %v373
  %v612 = vpack.c.b16 %v376, %v374
  %v613 = vpack.c.b16 %v379, %v377
  %v614 = vpack.c.b16 %v380, %v378
  %v615 = vpack.c.b16 %v383, %v381
  %v616 = vpack.c.b16 %v384, %v382
  %v617 = vpack.c.b16 %v387, %v385
  %v618 = vpack.c.b16 %v388, %v386
  %v619 = vpack.c.b16 %v391, %v389
  %v620 = vpack.c.b16 %v392, %v390
  %v621 = vpack.c.b16 %v395, %v393
  %v622 = vpack.c.b16 %v396, %v394
  %v623 = vpack.c.b16 %v399, %v397
  %v624 = vpack.c.b16 %v400, %v398
  %v625 = vpack.c.b16 %v403, %v401
  %v626 = vpack.c.b16 %v404, %v402
  %v627 = vpack.c.b16 %v407, %v405
  %v628 = vpack.c.b16 %v408, %v406
  %v629 = vpack.c.b16 %v411, %v409
  %v630 = vpack.c.b16 %v412, %v410
  %v631 = vpack.c.b16 %v415, %v413
  %v632 = vpack.c.b16 %v416, %v414
  %v633 = vpack.c.b16 %v419, %v417
  %v634 = vpack.c.b16 %v420, %v418
  %v635 = vpack.c.b16 %v423, %v421
  %v636 = vpack.c.b16 %v424, %v422
  %v637 = vpack.c.b16 %v427, %v425
  %v638 = vpack.c.b16 %v428, %v426
  %v639 = vpack.c.b16 %v431, %v429
  %v640 = vpack.c.b16 %v432, %v430
  %v641 = vpack.c.b16 %v435, %v433
  %v642 = vpack.c.b16 %v436, %v434
  %v643 = vpack.c.b16 %v439, %v437
  %v644 = vpack.c.b16 %v440, %v438
  %v645 = vpack.c.b16 %v443, %v441
  %v646 = vpack.c.b16 %v444, %v442
  %v647 = vpack.c.b16 %v447, %v445
  %v648 = vpack.c.b16 %v448, %v446
  %v649 = vpack.c.b16 %v451, %v449
  %v650 = vpack.c.b16 %v452, %v450
  %v651 = vpack.c.b16 %v455, %v453
  %v652 = vpack.c.b16 %v456, %v454
  %v653 = vpack.c.b16 %v459, %v457
  %v654 = vpack.c.b16 %v460, %v458
  %v655 = vpack.c.b16 %v463, %v461
  %v656 = vpack.c.b16 %v464, %v462
  %v657 = vpack.c.b16 %v467, %v465
  %v658 = vpack.c.b16 %v468, %v466
  %v659 = vpack.c.b16 %v471, %v469
  %v660 = vpack.c.b16 %v472, %v470
  %v661 = vpack.c.b16 %v475, %v473
  %v662 = vpack.c.b16 %v476, %v474
  %v663 = vpack.c.b16 %v479, %v477
  %v664 = vpack.c.b16 %v480, %v478
  %v665 = vpack.c.b16 %v483, %v481
  %v666 = vpack.c.b16 %v484, %v482
  %v667 = vpack.c.b16 %v487, %v485
  %v668 = vpack.c.b16 %v488, %v486
  %v669 = vpack.c.b16 %v491, %v489
  %v670 = vpack.c.b16 %v492, %v490
  %v671 = vpack.c.b16 %v495, %v493
  %v672 = vpack.c.b16 %v496, %v494
  %v673 = vpack.c.b16 %v499, %v497
  %v674 = vpack.c.b16 %v500, %v498
  %v675 = vpack.c.b16 %v503, %v501
  %v676 = vpack.c.b16 %v504, %v502
  %v677 = vpack.c.b16 %v507, %v505
  %v678 = vpack.c.b16 %v508, %v506
  %v679 = vpack.c.b16 %v511, %v509
  %v680 = vpack.c.b16 %v512, %v510
  %v681 = vpack.c.b16 %v515, %v513
  %v682 = vpack.c.b16 %v516, %v514
  %v683 = vpack.c.b16 %v519, %v517
  %v684 = vpack.c.b16 %v520, %v518
  %v685 = vpack.c.b16 %v523, %v521
  %v686 = vpack.c.b16 %v524, %v522
  %v687 = vpack.c.b16 %v527, %v525
  %v688 = vpack.c.b16 %v528, %v526
  %v689 = vpack.c.b16 %v531, %v529
  %v690 = vpack.c.b16 %v532, %v530
  %v691 = vpack.c.b16 %v535, %v533
  %v692 = vpack.c.b16 %v536, %v534
  %v693 = vpack.c.b16 %v539, %v537
  %v694 = vpack.c.b16 %v540, %v538
  %v695 = vpack.c.b16 %v543, %v541
  %v696 = vpack.c.b16 %v544, %v542
  %v697 = vpack.c.b16 %v547, %v545
  %v698 = vpack.c.b16 %v548, %v546
  %v699 = vpack.c.b16 %v551, %v549
  %v700 = vpack.c.b16 %v552, %v550
  %v701 = vpack.c.b16 %v555, %v553
  %v702 = vpack.c.b16 %v556, %v554
  %v703 = vpack.c.b16 %v559, %v557
  %v704 = vpack.c.b16 %v560, %v558
  %v705 = vpack.c.b16 %v563, %v561
  %v706 = vpack.c.b16 %v564, %v562
  %v707 = vpack.c.b16 %v567, %v565
  %v708 = vpack.c.b16 %v568, %v566
  %v709 = vpack.c.b16 %v571, %v569
  %v710 = vpack.c.b16 %v572, %v570
  %v711 = vpack.c.b16 %v575, %v573
  %v712 = vpack.c.b16 %v576, %v574
  %v713 = vpack.c.b16 %v579, %v577
  %v714 = vpack.c.b16 %v580, %v578
  %v715 = vpack.c.b16 %v583, %v581
  %v716 = vpack.c.b16 %v584, %v582
  %v717 = vpack.c.b16 %v587, %v585
  %v718 = vpack.c.b16 %v588, %v586
  %v719 = vpack.c.b16 %v591, %v589
  %v720 = vpack.c.b16 %v592, %v590
  %849 = vmatprep.subr.bf16.mxu0 %v594
  %850 = vmatpush1.bf16.msra.mxu0 %v593
  %851 = vmatprep.subr.bf16.mxu0 %v596
  %852 = vmatpush1.bf16.msra.mxu0 %v595
  %853 = vmatprep.subr.bf16.mxu0 %v598
  %854 = vmatpush1.bf16.msra.mxu0 %v597
  %855 = vmatprep.subr.bf16.mxu0 %v600
  %856 = vmatpush1.bf16.msra.mxu0 %v599
  %857 = vmatprep.subr.bf16.mxu0 %v602
  %858 = vmatpush1.bf16.msra.mxu0 %v601
  %859 = vmatprep.subr.bf16.mxu0 %v604
  %860 = vmatpush1.bf16.msra.mxu0 %v603
  %861 = vmatprep.subr.bf16.mxu0 %v606
  %862 = vmatpush1.bf16.msra.mxu0 %v605
  %863 = vmatprep.subr.bf16.mxu0 %v608
  %864 = vmatpush1.bf16.msra.mxu0 %v607
  %865 = vmatprep.subr.bf16.mxu0 %v610
  %866 = vmatpush1.bf16.msra.mxu0 %v609
  %867 = vmatprep.subr.bf16.mxu0 %v612
  %868 = vmatpush1.bf16.msra.mxu0 %v611
  %869 = vmatprep.subr.bf16.mxu0 %v614
  %870 = vmatpush1.bf16.msra.mxu0 %v613
  %871 = vmatprep.subr.bf16.mxu0 %v616
  %872 = vmatpush1.bf16.msra.mxu0 %v615
  %873 = vmatprep.subr.bf16.mxu0 %v618
  %874 = vmatpush1.bf16.msra.mxu0 %v617
  %875 = vmatprep.subr.bf16.mxu0 %v620
  %876 = vmatpush1.bf16.msra.mxu0 %v619
  %877 = vmatprep.subr.bf16.mxu0 %v622
  %878 = vmatpush1.bf16.msra.mxu0 %v621
  %879 = vmatprep.subr.bf16.mxu0 %v624
  %880 = vmatpush1.bf16.msra.mxu0 %v623
  %881 = vmatprep.mubr.bf16.mxu0 %v194
  %882 = vmatmul.mubr.bf16.gmra.mrb[0].mxu0 %v193
  %v883 = vpop.f32.mrb[0].mxu0
  %v884 = vadd.f32 0.0, %v883
  %v885 = vpop.f32.mrb[0].mxu0
  %v886 = vadd.f32 0.0, %v885
  %v887 = vpop.f32.mrb[0].mxu0
  %v888 = vadd.f32 0.0, %v887
  %v889 = vpop.f32.mrb[0].mxu0
  %v890 = vadd.f32 0.0, %v889
  %891 = vdwg.mxu0
  %892 = vmatprep.subr.bf16.mxu0 %v626
  %893 = vmatpush1.bf16.msra.mxu0 %v625
  %894 = vmatprep.subr.bf16.mxu0 %v628
  %895 = vmatpush1.bf16.msra.mxu0 %v627
  %896 = vmatprep.subr.bf16.mxu0 %v630
  %897 = vmatpush1.bf16.msra.mxu0 %v629
  %898 = vmatprep.subr.bf16.mxu0 %v632
  %899 = vmatpush1.bf16.msra.mxu0 %v631
  %900 = vmatprep.subr.bf16.mxu0 %v634
  %901 = vmatpush1.bf16.msra.mxu0 %v633
  %902 = vmatprep.subr.bf16.mxu0 %v636
  %903 = vmatpush1.bf16.msra.mxu0 %v635
  %904 = vmatprep.subr.bf16.mxu0 %v638
  %905 = vmatpush1.bf16.msra.mxu0 %v637
  %906 = vmatprep.subr.bf16.mxu0 %v640
  %907 = vmatpush1.bf16.msra.mxu0 %v639
  %908 = vmatprep.subr.bf16.mxu0 %v642
  %909 = vmatpush1.bf16.msra.mxu0 %v641
  %910 = vmatprep.subr.bf16.mxu0 %v644
  %911 = vmatpush1.bf16.msra.mxu0 %v643
  %912 = vmatprep.subr.bf16.mxu0 %v646
  %913 = vmatpush1.bf16.msra.mxu0 %v645
  %914 = vmatprep.subr.bf16.mxu0 %v648
  %915 = vmatpush1.bf16.msra.mxu0 %v647
  %916 = vmatprep.subr.bf16.mxu0 %v650
  %917 = vmatpush1.bf16.msra.mxu0 %v649
  %918 = vmatprep.subr.bf16.mxu0 %v652
  %919 = vmatpush1.bf16.msra.mxu0 %v651
  %920 = vmatprep.subr.bf16.mxu0 %v654
  %921 = vmatpush1.bf16.msra.mxu0 %v653
  %922 = vmatprep.subr.bf16.mxu0 %v656
  %923 = vmatpush1.bf16.msra.mxu0 %v655
  %924 = vmatprep.mubr.bf16.mxu0 %v196
  %925 = vmatmul.mubr.bf16.gmra.mrb[0].mxu0 %v195
  %v926 = vpop.f32.mrb[0].mxu0
  %v927 = vadd.f32 %v884, %v926
  %v928 = vpop.f32.mrb[0].mxu0
  %v929 = vadd.f32 %v886, %v928
  %v930 = vpop.f32.mrb[0].mxu0
  %v931 = vadd.f32 %v888, %v930
  %v932 = vpop.f32.mrb[0].mxu0
  %v933 = vadd.f32 %v890, %v932
  %934 = vdwg.mxu0
  %935 = vmatprep.subr.bf16.mxu0 %v658
  %936 = vmatpush1.bf16.msra.mxu0 %v657
  %937 = vmatprep.subr.bf16.mxu0 %v660
  %938 = vmatpush1.bf16.msra.mxu0 %v659
  %939 = vmatprep.subr.bf16.mxu0 %v662
  %940 = vmatpush1.bf16.msra.mxu0 %v661
  %941 = vmatprep.subr.bf16.mxu0 %v664
  %942 = vmatpush1.bf16.msra.mxu0 %v663
  %943 = vmatprep.subr.bf16.mxu0 %v666
  %944 = vmatpush1.bf16.msra.mxu0 %v665
  %945 = vmatprep.subr.bf16.mxu0 %v668
  %946 = vmatpush1.bf16.msra.mxu0 %v667
  %947 = vmatprep.subr.bf16.mxu0 %v670
  %948 = vmatpush1.bf16.msra.mxu0 %v669
  %949 = vmatprep.subr.bf16.mxu0 %v672
  %950 = vmatpush1.bf16.msra.mxu0 %v671
  %951 = vmatprep.subr.bf16.mxu0 %v674
  %952 = vmatpush1.bf16.msra.mxu0 %v673
  %953 = vmatprep.subr.bf16.mxu0 %v676
  %954 = vmatpush1.bf16.msra.mxu0 %v675
  %955 = vmatprep.subr.bf16.mxu0 %v678
  %956 = vmatpush1.bf16.msra.mxu0 %v677
  %957 = vmatprep.subr.bf16.mxu0 %v680
  %958 = vmatpush1.bf16.msra.mxu0 %v679
  %959 = vmatprep.subr.bf16.mxu0 %v682
  %960 = vmatpush1.bf16.msra.mxu0 %v681
  %961 = vmatprep.subr.bf16.mxu0 %v684
  %962 = vmatpush1.bf16.msra.mxu0 %v683
  %963 = vmatprep.subr.bf16.mxu0 %v686
  %964 = vmatpush1.bf16.msra.mxu0 %v685
  %965 = vmatprep.subr.bf16.mxu0 %v688
  %966 = vmatpush1.bf16.msra.mxu0 %v687
  %967 = vmatprep.mubr.bf16.mxu0 %v198
  %968 = vmatmul.mubr.bf16.gmra.mrb[0].mxu0 %v197
  %v969 = vpop.f32.mrb[0].mxu0
  %v970 = vadd.f32 %v927, %v969
  %v971 = vpop.f32.mrb[0].mxu0
  %v972 = vadd.f32 %v929, %v971
  %v973 = vpop.f32.mrb[0].mxu0
  %v974 = vadd.f32 %v931, %v973
  %v975 = vpop.f32.mrb[0].mxu0
  %v976 = vadd.f32 %v933, %v975
  %977 = vdwg.mxu0
  %978 = vmatprep.subr.bf16.mxu0 %v690
  %979 = vmatpush1.bf16.msra.mxu0 %v689
  %980 = vmatprep.subr.bf16.mxu0 %v692
  %981 = vmatpush1.bf16.msra.mxu0 %v691
  %982 = vmatprep.subr.bf16.mxu0 %v694
  %983 = vmatpush1.bf16.msra.mxu0 %v693
  %984 = vmatprep.subr.bf16.mxu0 %v696
  %985 = vmatpush1.bf16.msra.mxu0 %v695
  %986 = vmatprep.subr.bf16.mxu0 %v698
  %987 = vmatpush1.bf16.msra.mxu0 %v697
  %988 = vmatprep.subr.bf16.mxu0 %v700
  %989 = vmatpush1.bf16.msra.mxu0 %v699
  %990 = vmatprep.subr.bf16.mxu0 %v702
  %991 = vmatpush1.bf16.msra.mxu0 %v701
  %992 = vmatprep.subr.bf16.mxu0 %v704
  %993 = vmatpush1.bf16.msra.mxu0 %v703
  %994 = vmatprep.subr.bf16.mxu0 %v706
  %995 = vmatpush1.bf16.msra.mxu0 %v705
  %996 = vmatprep.subr.bf16.mxu0 %v708
  %997 = vmatpush1.bf16.msra.mxu0 %v707
  %998 = vmatprep.subr.bf16.mxu0 %v710
  %999 = vmatpush1.bf16.msra.mxu0 %v709
  %1000 = vmatprep.subr.bf16.mxu0 %v712
  %1001 = vmatpush1.bf16.msra.mxu0 %v711
  %1002 = vmatprep.subr.bf16.mxu0 %v714
  %1003 = vmatpush1.bf16.msra.mxu0 %v713
  %1004 = vmatprep.subr.bf16.mxu0 %v716
  %1005 = vmatpush1.bf16.msra.mxu0 %v715
  %1006 = vmatprep.subr.bf16.mxu0 %v718
  %1007 = vmatpush1.bf16.msra.mxu0 %v717
  %1008 = vmatprep.subr.bf16.mxu0 %v720
  %1009 = vmatpush1.bf16.msra.mxu0 %v719
  %1010 = vmatprep.mubr.bf16.mxu0 %v200
  %1011 = vmatmul.mubr.bf16.gmra.mrb[0].mxu0 %v199
  %v1012 = vpop.f32.mrb[0].mxu0
  %v1013 = vadd.f32 %v970, %v1012
  %v1014 = vpop.f32.mrb[0].mxu0
  %v1015 = vadd.f32 %v972, %v1014
  %v1016 = vpop.f32.mrb[0].mxu0
  %v1017 = vadd.f32 %v974, %v1016
  %v1018 = vpop.f32.mrb[0].mxu0
  %v1019 = vadd.f32 %v976, %v1018
  %1020 = vdwg.mxu0
  %v1021 = vadd.f32 %v29, %v1013
  %v1022 = vadd.f32 %v30, %v1015
  %v1023 = vadd.f32 %v31, %v1017
  %v1024 = vadd.f32 %v32, %v1019
  %1025 = vst [vmem:[#allocation2] sm:$0xff] %v1021
  %1026 = vst [vmem:[#allocation2 + $0x8] sm:$0xff] %v1022
  %1027 = vst [vmem:[#allocation2 + $0x10] sm:$0xff] %v1023
  %1028 = vst [vmem:[#allocation2 + $0x18] sm:$0xff] %v1024
  // Predicated region
  $region26: #{bottleneck_head_forward.1} parent=0 // pred_check
    %p1029 = pneg %p21
  $region27: #{bottleneck_head_forward.1} parent=0 // pred_check_branch
    %1031 = sbr.rel (%p1029) target = $region29
  $region28: #{bottleneck_head_forward.1} parent=0 // pred_region
    %v1032 = vld [vmem:[#allocation2] sm:$0xff]
    %v1033 = vld [vmem:[#allocation2 + $0x8] sm:$0xff]
    %v1034 = vld [vmem:[#allocation2 + $0x10] sm:$0xff]
    %v1035 = vld [vmem:[#allocation2 + $0x18] sm:$0xff]
    %v1036 = vld [vmem:[%s2] sm:$0x3]
    %v1038 = vlaneseq
    %v1039 = vshrl.u32 %v1038, 7
    %v1040 = vsub.s32 0, %v1039
    %v1041 = vrot.slane %v1036, %v1040
    %v1042 = vlaneseq
    %v1043 = vshrl.u32 %v1042, 7
    %v1044 = vsub.s32 1, %v1043
    %v1045 = vrot.slane %v1036, %v1044
    %v1048 = vadd.f32 %v1032, %v1041
    %v1049 = vadd.f32 %v1033, %v1045
    %v1050 = vadd.f32 %v1034, %v1041
    %v1051 = vadd.f32 %v1035, %v1045
    %v1052 = vpack.c.bf16 %v1050, %v1048
    %v1053 = vpack.c.bf16 %v1051, %v1049
    %v1054 = vld [vmem:[%s3] sm:$0xf]
    %v1055 = vld [vmem:[%s3 + $0x4] sm:$0xf]
    %v1056 = vld [vmem:[%s3 + $0x8] sm:$0xf]
    %v1057 = vld [vmem:[%s3 + $0xc] sm:$0xf]
    %v1058 = vld [vmem:[%s3 + $0x10] sm:$0xf]
    %v1059 = vld [vmem:[%s3 + $0x14] sm:$0xf]
    %v1060 = vld [vmem:[%s3 + $0x18] sm:$0xf]
    %v1061 = vld [vmem:[%s3 + $0x1c] sm:$0xf]
    %v1062 = vld [vmem:[%s3 + $0x20] sm:$0xf]
    %v1063 = vld [vmem:[%s3 + $0x24] sm:$0xf]
    %v1064 = vld [vmem:[%s3 + $0x28] sm:$0xf]
    %v1065 = vld [vmem:[%s3 + $0x2c] sm:$0xf]
    %v1066 = vld [vmem:[%s3 + $0x30] sm:$0xf]
    %v1067 = vld [vmem:[%s3 + $0x34] sm:$0xf]
    %v1068 = vld [vmem:[%s3 + $0x38] sm:$0xf]
    %v1069 = vld [vmem:[%s3 + $0x3c] sm:$0xf]
    %v1070 = vld [vmem:[%s3 + $0x40] sm:$0xf]
    %v1071 = vld [vmem:[%s3 + $0x44] sm:$0xf]
    %v1072 = vld [vmem:[%s3 + $0x48] sm:$0xf]
    %v1073 = vld [vmem:[%s3 + $0x4c] sm:$0xf]
    %v1074 = vld [vmem:[%s3 + $0x50] sm:$0xf]
    %v1075 = vld [vmem:[%s3 + $0x54] sm:$0xf]
    %v1076 = vld [vmem:[%s3 + $0x58] sm:$0xf]
    %v1077 = vld [vmem:[%s3 + $0x5c] sm:$0xf]
    %v1078 = vld [vmem:[%s3 + $0x60] sm:$0xf]
    %v1079 = vld [vmem:[%s3 + $0x64] sm:$0xf]
    %v1080 = vld [vmem:[%s3 + $0x68] sm:$0xf]
    %v1081 = vld [vmem:[%s3 + $0x6c] sm:$0xf]
    %v1082 = vld [vmem:[%s3 + $0x70] sm:$0xf]
    %v1083 = vld [vmem:[%s3 + $0x74] sm:$0xf]
    %v1084 = vld [vmem:[%s3 + $0x78] sm:$0xf]
    %v1085 = vld [vmem:[%s3 + $0x7c] sm:$0xf]
    %v1086 = vld [vmem:[%s4] sm:$0x1]
    %v1088 = vlaneseq
    %v1089 = vshrl.u32 %v1088, 7
    %v1090 = vsub.s32 0, %v1089
    %v1091 = vrot.slane %v1086, %v1090
    %v1125 = vunpack.c.l.b16 %v1054
    %v1126 = vunpack.c.l.b16 %v1055
    %v1127 = vunpack.c.l.b16 %v1056
    %v1128 = vunpack.c.l.b16 %v1057
    %v1129 = vunpack.c.l.b16 %v1058
    %v1130 = vunpack.c.l.b16 %v1059
    %v1131 = vunpack.c.l.b16 %v1060
    %v1132 = vunpack.c.l.b16 %v1061
    %v1133 = vunpack.c.l.b16 %v1062
    %v1134 = vunpack.c.l.b16 %v1063
    %v1135 = vunpack.c.l.b16 %v1064
    %v1136 = vunpack.c.l.b16 %v1065
    %v1137 = vunpack.c.l.b16 %v1066
    %v1138 = vunpack.c.l.b16 %v1067
    %v1139 = vunpack.c.l.b16 %v1068
    %v1140 = vunpack.c.l.b16 %v1069
    %v1141 = vunpack.c.l.b16 %v1070
    %v1142 = vunpack.c.l.b16 %v1071
    %v1143 = vunpack.c.l.b16 %v1072
    %v1144 = vunpack.c.l.b16 %v1073
    %v1145 = vunpack.c.l.b16 %v1074
    %v1146 = vunpack.c.l.b16 %v1075
    %v1147 = vunpack.c.l.b16 %v1076
    %v1148 = vunpack.c.l.b16 %v1077
    %v1149 = vunpack.c.l.b16 %v1078
    %v1150 = vunpack.c.l.b16 %v1079
    %v1151 = vunpack.c.l.b16 %v1080
    %v1152 = vunpack.c.l.b16 %v1081
    %v1153 = vunpack.c.l.b16 %v1082
    %v1154 = vunpack.c.l.b16 %v1083
    %v1155 = vunpack.c.l.b16 %v1084
    %v1156 = vunpack.c.l.b16 %v1085
    %v1157 = vpack.c.b16 %v1126, %v1125
    %v1158 = vpack.c.b16 %v1128, %v1127
    %v1159 = vpack.c.b16 %v1130, %v1129
    %v1160 = vpack.c.b16 %v1132, %v1131
    %v1161 = vpack.c.b16 %v1134, %v1133
    %v1162 = vpack.c.b16 %v1136, %v1135
    %v1163 = vpack.c.b16 %v1138, %v1137
    %v1164 = vpack.c.b16 %v1140, %v1139
    %v1165 = vpack.c.b16 %v1142, %v1141
    %v1166 = vpack.c.b16 %v1144, %v1143
    %v1167 = vpack.c.b16 %v1146, %v1145
    %v1168 = vpack.c.b16 %v1148, %v1147
    %v1169 = vpack.c.b16 %v1150, %v1149
    %v1170 = vpack.c.b16 %v1152, %v1151
    %v1171 = vpack.c.b16 %v1154, %v1153
    %v1172 = vpack.c.b16 %v1156, %v1155
    %1189 = vmatprep.subr.bf16.mxu0 0
    %1190 = vmatpush1.bf16.msra.mxu0 %v1157
    %1191 = vmatprep.subr.bf16.mxu0 0
    %1192 = vmatpush1.bf16.msra.mxu0 %v1158
    %1193 = vmatprep.subr.bf16.mxu0 0
    %1194 = vmatpush1.bf16.msra.mxu0 %v1159
    %1195 = vmatprep.subr.bf16.mxu0 0
    %1196 = vmatpush1.bf16.msra.mxu0 %v1160
    %1197 = vmatprep.subr.bf16.mxu0 0
    %1198 = vmatpush1.bf16.msra.mxu0 %v1161
    %1199 = vmatprep.subr.bf16.mxu0 0
    %1200 = vmatpush1.bf16.msra.mxu0 %v1162
    %1201 = vmatprep.subr.bf16.mxu0 0
    %1202 = vmatpush1.bf16.msra.mxu0 %v1163
    %1203 = vmatprep.subr.bf16.mxu0 0
    %1204 = vmatpush1.bf16.msra.mxu0 %v1164
    %1205 = vmatprep.subr.bf16.mxu0 0
    %1206 = vmatpush1.bf16.msra.mxu0 %v1165
    %1207 = vmatprep.subr.bf16.mxu0 0
    %1208 = vmatpush1.bf16.msra.mxu0 %v1166
    %1209 = vmatprep.subr.bf16.mxu0 0
    %1210 = vmatpush1.bf16.msra.mxu0 %v1167
    %1211 = vmatprep.subr.bf16.mxu0 0
    %1212 = vmatpush1.bf16.msra.mxu0 %v1168
    %1213 = vmatprep.subr.bf16.mxu0 0
    %1214 = vmatpush1.bf16.msra.mxu0 %v1169
    %1215 = vmatprep.subr.bf16.mxu0 0
    %1216 = vmatpush1.bf16.msra.mxu0 %v1170
    %1217 = vmatprep.subr.bf16.mxu0 0
    %1218 = vmatpush1.bf16.msra.mxu0 %v1171
    %1219 = vmatprep.subr.bf16.mxu0 0
    %1220 = vmatpush1.bf16.msra.mxu0 %v1172
    %1221 = vmatprep.mubr.bf16.mxu0 %v1053
    %1222 = vmatmul.mubr.bf16.gmra.mrb[0].mxu0 %v1052
    %v1223 = vpop.f32.mrb[0].mxu0
    %v1224 = vadd.f32 %v1091, %v1223
    %v1225 = vpop.f32.mrb[0].mxu0
    %v1226 = vpop.f32.mrb[0].mxu0
    %v1227 = vadd.f32 %v1091, %v1226
    %v1228 = vpop.f32.mrb[0].mxu0
    %1229 = vdwg.mxu0
    %1230 = vst [vmem:[%s5] sm:$0xff] %v1224
    %1231 = vst [vmem:[%s5 + $0x8] sm:$0xff] %v1227
  $region29: #{bottleneck_head_forward.1} parent=0 // pred_fallthru
    _
  // Predicated region
  $region30: #{bottleneck_head_forward.1} parent=0 // pred_check
    _
  $region31: #{bottleneck_head_forward.1} parent=0 // pred_check_branch
    %1233 = sbr.rel (0) target = $region33
  $region32: #{bottleneck_head_forward.1} parent=0 // pred_region
    _
  $region33: #{bottleneck_head_forward.1} parent=0 // pred_fallthru
    _
  // Predicated region
  $region34: #{bottleneck_head_forward.1} parent=0 // pred_check
    _
  $region35: #{bottleneck_head_forward.1} parent=0 // pred_check_branch
    %1235 = sbr.rel (0) target = $region37
  $region36: #{bottleneck_head_forward.1} parent=0 // pred_region
    _
  $region37: #{bottleneck_head_forward.1} parent=0 // pred_fallthru
    _

</llo_original>
